<compile_context>
chip_gen: v7x
topology: tpu7x:2x2x1
jax: 0.10.0
libtpu: 0.0.40
codegen_flags: <defaults>
</compile_context>

<pallas_src>
import functools

import jax
import jax.numpy as jnp
from jax.experimental import pallas as pl
from jax.experimental.pallas import tpu as pltpu


def _round_up(x, m):
    return (x + m - 1) // m * m


def _round_down(x, m):
    return x // m * m


# ---------------------------------------------------------------------------
# Kernel A: single column chunk (full rows fit in one block).  1-D grid.
# ---------------------------------------------------------------------------
def _lse_kernel_full_row(x_ref, o_ref, *, lambda_lse):
    x = x_ref[...].astype(jnp.float32)        # no-op for f32, upcast for bf16
    e = jnp.exp(x * lambda_lse)               # faithful: no max subtraction
    s = jnp.sum(e, axis=1, keepdims=True)
    o_ref[...] = (jnp.log(s) * (1.0 / lambda_lse)).astype(o_ref.dtype)


# ---------------------------------------------------------------------------
# Kernel B: column-chunked reduction (very wide N).  2-D grid, reduction last.
# ---------------------------------------------------------------------------
def _lse_kernel_chunked(x_ref, o_ref, acc_ref, *, lambda_lse, n_total, tile_n,
                        needs_col_mask):
    # x_ref:   (tile_b, tile_n) input tile in VMEM
    # o_ref:   (tile_b, 1)      output tile (resident across k)
    # acc_ref: (tile_b, 128)    lane-dense f32 accumulator (VMEM scratch)
    k = pl.program_id(1)
    last = pl.num_programs(1) - 1

    @pl.when(k == 0)
    def _():
        acc_ref[...] = jnp.zeros_like(acc_ref)

    x = x_ref[...].astype(jnp.float32)
    e = jnp.exp(x * lambda_lse)

    n_lane_chunks = tile_n // 128              # tile_n % 128 == 0 by construction

    def _fold_to_128(v):
        # Lane-dense partial sum: (tile_b, tile_n) -> (tile_b, 128) using only
        # static 128-aligned slices + VPU adds (no XLU cross-lane reduce).
        p = v[:, 0:128]
        for c in range(1, n_lane_chunks):
            p = p + v[:, c * 128:(c + 1) * 128]
        return p

    if needs_col_mask:
        # Mask only on the last chunk; steady-state chunks stay mask-free.
        @pl.when(k < last)
        def _():
            acc_ref[...] += _fold_to_128(e)

        @pl.when(k == last)
        def _():
            col = jax.lax.broadcasted_iota(jnp.int32, e.shape, 1) + k * tile_n
            acc_ref[...] += _fold_to_128(jnp.where(col < n_total, e, 0.0))
    else:
        acc_ref[...] += _fold_to_128(e)

    @pl.when(k == last)
    def _():
        s = jnp.sum(acc_ref[...], axis=1, keepdims=True)   # single XLU reduce
        o_ref[...] = (jnp.log(s) * (1.0 / lambda_lse)).astype(o_ref.dtype)


def logsumexp_pallas(x, lambda_lse, *,
                     block_budget_bytes=8 * 1024 * 1024,
                     max_chunk_n=8192,
                     vmem_limit_bytes=48 * 1024 * 1024,
                     split_rows_for_megacore=True):
    """LogSumExp over axis 1 with keepdim, scaled by lambda_lse."""
    B, N = x.shape
    lam = float(lambda_lse)
    itemsize = jnp.dtype(x.dtype).itemsize
    sub = max(8, 32 // itemsize)               # packed sublane multiple per dtype
    B_up = _round_up(B, sub)

    # ---- column tiling: prefer full rows (contiguous DMA, 1-D grid, no
    # scratch / mask); chunk only when `sub` full rows overflow the budget ----
    full_rows = N * itemsize * sub <= block_budget_bytes
    if full_rows:
        tile_n, n_col_blocks, needs_col_mask = N, 1, False
    else:
        tile_n = min(
            max(_round_down(block_budget_bytes // (sub * itemsize), 128), 128),
            max_chunk_n)
        n_col_blocks = pl.cdiv(N, tile_n)
        needs_col_mask = (N % tile_n) != 0

    # ---- row tiling: biggest sublane multiple whose block fits the budget ----
    rows_fit = max(block_budget_bytes // (tile_n * itemsize), sub)
    tile_b = max(min(B_up, _round_down(rows_fit, sub)), sub)

    # v7x has 2 TensorCores: make sure the "parallel" row axis has >= 2 blocks
    # whenever B allows it, so the grid can be sharded across both cores.
    if split_rows_for_megacore and B_up >= 2 * sub:
        tile_b = min(tile_b, _round_up(pl.cdiv(B_up, 2), sub))
    # TODO(synk): for tiny-B / huge-N shapes a per-core column split (partial
    # sums combined in a small epilogue) would also engage the second v7x core.

    # Ragged last row block: reads are padded (garbage rows), out-of-bounds
    # writes are dropped; rows are independent so valid rows are unaffected.
    n_row_blocks = pl.cdiv(B, tile_b)

    if n_col_blocks == 1:
        kernel = functools.partial(_lse_kernel_full_row, lambda_lse=lam)
        grid = (n_row_blocks,)
        in_specs = [pl.BlockSpec((tile_b, N), lambda i: (i, 0))]
        out_specs = pl.BlockSpec((tile_b, 1), lambda i: (i, 0))
        scratch_shapes = []
        dim_sem = ("parallel",)
    else:
        kernel = functools.partial(_lse_kernel_chunked, lambda_lse=lam,
                                   n_total=N, tile_n=tile_n,
                                   needs_col_mask=needs_col_mask)
        grid = (n_row_blocks, n_col_blocks)    # reduction axis last
        in_specs = [pl.BlockSpec((tile_b, tile_n), lambda i, k: (i, k))]
        out_specs = pl.BlockSpec((tile_b, 1), lambda i, k: (i, 0))
        scratch_shapes = [pltpu.VMEM((tile_b, 128), jnp.float32)]
        dim_sem = ("parallel", "arbitrary")

    return pl.pallas_call(
        kernel,
        out_shape=jax.ShapeDtypeStruct((B, 1), x.dtype),
        grid_spec=pltpu.PrefetchScalarGridSpec(
            num_scalar_prefetch=0,
            grid=grid,
            in_specs=in_specs,
            out_specs=out_specs,
            scratch_shapes=scratch_shapes,
        ),
        compiler_params=pltpu.CompilerParams(
            dimension_semantics=dim_sem,
            # <= 16 MiB of double-buffered input by construction; 48 MiB is a
            # safe explicit scoped-VMEM limit on v5e / v6e / v7x alike
            # (v7x only has 64 MiB physical VMEM per TensorCore).
            vmem_limit_bytes=vmem_limit_bytes,
        ),
    )(x)


def logsumexp_ref(x, lambda_lse):
    # Pure-JAX reference with identical (non-stabilized) semantics.
    e = jnp.exp(x.astype(jnp.float32) * lambda_lse)
    return (jnp.log(jnp.sum(e, axis=1, keepdims=True)) / lambda_lse).astype(x.dtype)


if __name__ == "__main__":
    lambda_lse = 6.0  # module __init__ arg

    key = jax.random.PRNGKey(0)
    k1, k2, k3 = jax.random.split(key, 3)

    # 1) Primary demo: 16 images x 256 region/word scores.  Full-row path,
    #    row axis split into 2 blocks (keeps both v7x TensorCores busy).
    B, N = 16, 256
    x = jax.random.uniform(k1, (B, N), dtype=jnp.float32, minval=-1.0, maxval=1.0)
    out = jax.block_until_ready(logsumexp_pallas(x, lambda_lse))
    ref = logsumexp_ref(x, lambda_lse)
    assert out.shape == (B, 1), out.shape
    assert jnp.allclose(out, ref, atol=1e-5, rtol=1e-5), (
        float(jnp.max(jnp.abs(out - ref))))

    # 2) Chunked-column path + masked tail + ragged last row block (no pad):
    #    tiny block budget forces tile_n=256 (2 chunks over N=384, tail mask)
    #    and tile_b=8 (grid rows = cdiv(44, 8) = 6, last row block ragged).
    B2, N2 = 44, 384
    x2 = jax.random.uniform(k2, (B2, N2), dtype=jnp.float32, minval=-1.0, maxval=1.0)
    out2 = jax.block_until_ready(
        logsumexp_pallas(x2, lambda_lse, block_budget_bytes=8 * 1024))
    ref2 = logsumexp_ref(x2, lambda_lse)
    assert out2.shape == (B2, 1), out2.shape
    assert jnp.allclose(out2, ref2, atol=1e-5, rtol=1e-5), (
        float(jnp.max(jnp.abs(out2 - ref2))))

    # 3) bf16 input: 16-row packed sublane alignment + ragged last row block.
    B3, N3 = 20, 200
    x3 = jax.random.uniform(k3, (B3, N3), dtype=jnp.float32,
                            minval=-1.0, maxval=1.0).astype(jnp.bfloat16)
    out3 = jax.block_until_ready(logsumexp_pallas(x3, lambda_lse))
    ref3 = logsumexp_ref(x3, lambda_lse)
    assert out3.shape == (B3, 1), out3.shape
    assert jnp.allclose(out3.astype(jnp.float32), ref3.astype(jnp.float32),
                        atol=2e-2, rtol=2e-2), (
        float(jnp.max(jnp.abs(out3.astype(jnp.float32) - ref3.astype(jnp.float32)))))

    print("KERNEL_OK")
</pallas_src>

<mosaic_0001>
module attributes {stable_mosaic.version = 11 : i64} {
  func.func @_lse_kernel_full_row(%arg0: i32, %arg1: memref<8x256xf32, #tpu.memory_space<vmem>>, %arg2: memref<8x1xf32, #tpu.memory_space<vmem>>) attributes {dimension_semantics = [#tpu.dimension_semantics<parallel>], iteration_bounds = array<i64: 2>, scalar_prefetch = 0 : i64, scratch_operands = 0 : i64, tpu.core_type = #tpu.core_type<tc>, window_params = [{transform_indices = @transform_0, window_bounds = array<i64: 8, 256>}, {transform_indices = @transform_1, window_bounds = array<i64: 8, 1>}]} {
    %c0 = arith.constant 0 : index
    %c0_0 = arith.constant 0 : index
    %0 = vector.load %arg1[%c0, %c0_0] : memref<8x256xf32, #tpu.memory_space<vmem>>, vector<8x256xf32>
    %cst = arith.constant 6.000000e+00 : f32
    %1 = vector.broadcast %cst : f32 to vector<8x256xf32>
    %2 = arith.mulf %0, %1 : vector<8x256xf32>
    %3 = math.exp %2 : vector<8x256xf32>
    %cst_1 = arith.constant dense<0.000000e+00> : vector<8xf32>
    %4 = vector.multi_reduction <add>, %3, %cst_1 [1] : vector<8x256xf32> to vector<8xf32>
    %5 = vector.shape_cast %4 : vector<8xf32> to vector<8x1xf32>
    %6 = math.log %5 : vector<8x1xf32>
    %cst_2 = arith.constant 0.166666672 : f32
    %7 = vector.broadcast %cst_2 : f32 to vector<8x1xf32>
    %8 = arith.mulf %6, %7 : vector<8x1xf32>
    %c0_3 = arith.constant 0 : index
    %c0_4 = arith.constant 0 : index
    %9 = vector.load %arg2[%c0_3, %c0_4] : memref<8x1xf32, #tpu.memory_space<vmem>>, vector<8x1xf32>
    tpu.vector_store %arg2[%c0_3, %c0_4], %8 {strides = array<i32>} : memref<8x1xf32, #tpu.memory_space<vmem>>, vector<8x1xf32>,
    return
  }
  func.func @transform_0(%arg0: i32) -> (i32, i32) {
    %c0_i32 = arith.constant 0 : i32
    %c0_i32_0 = arith.constant 0 : i32
    return %arg0, %c0_i32 : i32, i32
  }
  func.func @transform_1(%arg0: i32) -> (i32, i32) {
    %c0_i32 = arith.constant 0 : i32
    %c0_i32_0 = arith.constant 0 : i32
    return %arg0, %c0_i32 : i32, i32
  }
}

</mosaic_0001>

<llo_original>
// kernel: tpu_custom_call.1
$region0: #{tpu_custom_call.1}
  #allocation0 [shape = 'u32[]', space=smem, size = 0x4, offset = 0x4, fixed_abs, tag = 'smem constant byte address 0x4 - core index']
  #allocation1 [shape = 'u32[144,128]{1,0:T(1,128)}', space=vmem, size = 0x12000, scoped, tag = 'internal scratch']
  %s0 = inlined_call_operand.hbm [shape: f32[16,256], index: 0, kind: input, shape index: {}]
  %s1 = inlined_call_operand.vmem [shape: f32[16,1], index: 1, kind: output, shape index: {}]
  %s2 = sld [smem:[#allocation0]]
  $region41: #{tpu_custom_call.1} parent=0
    _
  %s4 = ssub.s32 1, %s2
  %s5 = scalar_select 0, %s4, %s2
  $region1: #{tpu_custom_call.1} parent=0
    #allocation2 [shape = 'u8[16384]{0}', space=vmem, size = 0x4000, scoped, tag = 'input window, operand 0']
    #allocation3 [shape = 's32[2]{0}', space=sflag, size = 0x8, scoped, tag = 'scoped memory for tpu_custom_call.1']
    %6 = vsyncpa [#allocation3], 0
    %s7 = scalar_lea.sflag [#allocation3], 1
    %8 = vsyncpa %s7, 0
    loop: start=0, step=1, limit=4
    $region2: #{tpu_custom_call.1} parent=1 // loop_pre_header
      _
    $region3: #{tpu_custom_call.1} parent=1 // loop_header
      %s10 = sphi 0, %s14
      %p11 = scmp.ge.s32.totalorder %s10, 4
      %s20 = sphi 0, %s22
      %s23 = sphi 0, %s20
      %s24 = sphi 0, %s23
      %s40 = sphi 0, %s24
      %s46 = sphi 0, %s48
      %s49 = sphi 0, %s46
      %s50 = sphi 0, %s49
      %s66 = sphi 0, %s50
    $region4: #{tpu_custom_call.1} parent=1 // loop_header_branch
      %13 = sbr.rel (%p11) target = $region8
    $region5: #{tpu_custom_call.1} parent=1 // loop_body
      %s15 = ssub.s32 %s10, 1
      %s16 = ssub.s32 %s10, 2
      %s17 = sadd.s32 %s10, 1
      %s18 = ssub.s32 %s10, %s17
      %p19 = scmp.eq.s32.totalorder %s18, 0
      %s21 = sadd.s32 %s20, 1
      %s22 = scalar_select %p19, %s20, %s21
      %p25 = pneg %p19
      %p26 = scmp.eq.s32.totalorder %s10, 1
      %p27 = por %p25, %p26
      %p28 = scmp.ne.s32.totalorder %s20, %s23
      %p29 = scmp.eq.s32.totalorder %s10, 0
      %p30 = por %p28, %p29
      %p31 = scmp.ne.s32.totalorder %s20, %s23
      %p32 = scmp.eq.s32.totalorder %s15, 1
      %p33 = por %p31, %p32
      %p34 = scmp.ne.s32.totalorder %s23, %s24
      %p35 = scmp.eq.s32.totalorder %s15, 0
      %p36 = por %p34, %p35
      %p37 = scmp.ne.s32.totalorder %s23, %s24
      %p38 = scmp.eq.s32.totalorder %s16, 1
      %p39 = por %p37, %p38
      %p41 = scmp.ne.s32.totalorder %s24, %s40
      %p42 = scmp.eq.s32.totalorder %s16, 0
      %p43 = por %p41, %p42
      %s44 = ssub.s32 %s10, %s17
      %p45 = scmp.eq.s32.totalorder %s44, 0
      %s47 = sadd.s32 %s46, 1
      %s48 = scalar_select %p45, %s46, %s47
      %p51 = pneg %p45
      %p52 = scmp.eq.s32.totalorder %s10, 1
      %p53 = por %p51, %p52
      %p54 = scmp.ne.s32.totalorder %s46, %s49
      %p55 = scmp.eq.s32.totalorder %s10, 0
      %p56 = por %p54, %p55
      %p57 = scmp.ne.s32.totalorder %s46, %s49
      %p58 = scmp.eq.s32.totalorder %s15, 1
      %p59 = por %p57, %p58
      %p60 = scmp.ne.s32.totalorder %s49, %s50
      %p61 = scmp.eq.s32.totalorder %s15, 0
      %p62 = por %p60, %p61
      %p63 = scmp.ne.s32.totalorder %s49, %s50
      %p64 = scmp.eq.s32.totalorder %s16, 1
      %p65 = por %p63, %p64
      %p67 = scmp.ne.s32.totalorder %s50, %s66
      %p68 = scmp.eq.s32.totalorder %s16, 0
      %p69 = por %p67, %p68
      %p70 = scmp.le.s32.totalorder 1, %s10
      %p71 = scmp.lt.s32.totalorder %s10, 3
      %p72 = pnand %p70, %p71
      %p73 = pneg %p72
      // Predicated region
      $region9: #{tpu_custom_call.1} parent=5 // pred_check
        _
      $region10: #{tpu_custom_call.1} parent=5 // pred_check_branch
        %75 = sbr.rel (%p72) target = $region12
      $region11: #{tpu_custom_call.1} parent=5 // pred_region
        %s76 = ssub.s32 %s10, 1
      $region12: #{tpu_custom_call.1} parent=5 // pred_fallthru
        _
      %p77 = scmp.lt.s32.totalorder %s10, 2
      // Predicated region
      $region13: #{tpu_custom_call.1} parent=5 // pred_check
        %p78 = pneg %p77
      $region14: #{tpu_custom_call.1} parent=5 // pred_check_branch
        %80 = sbr.rel (%p78) target = $region16
      $region15: #{tpu_custom_call.1} parent=5 // pred_region
        // Predicated region
        $region17: #{tpu_custom_call.1} parent=15 // pred_check
          %p81 = pneg %p30
        $region18: #{tpu_custom_call.1} parent=15 // pred_check_branch
          %83 = sbr.rel (%p81) target = $region20
        $region19: #{tpu_custom_call.1} parent=15 // pred_region
          %s84 = sand.u32 %s20, 1
          %s85 = scalar_lea.sflag [#allocation3], %s84
          %s86 = sand.u32 %s20, 1
          %s87 = smul.addr %s86, 16
          %s88 = scalar_lea.vmem [#allocation2], %s87
          %s90 = ssub.s32 256, 256
          %91 = vsyncadd %s85, %s90
          %s92 = smul.addr %s10, 2
          %s93 = smul.addr %s92, 128
          %s94 = scalar_lea.hbm %s0, %s93
          %s96 = sshll.u32 %s88, 4
          %s97 = int_to_ptr.vmem [resolvable:$true] %s96
          %99 = dma.hbm_to_vmem [thread:$0]  %s94, 256, %s97, %s85
        $region20: #{tpu_custom_call.1} parent=15 // pred_fallthru
          _
      $region16: #{tpu_custom_call.1} parent=5 // pred_fallthru
        _
      %p100 = scmp.le.s32.totalorder 1, %s10
      %p101 = scmp.lt.s32.totalorder %s10, 3
      %p102 = pnand %p100, %p101
      %p103 = pneg %p102
      // Predicated region
      $region21: #{tpu_custom_call.1} parent=5 // pred_check
        _
      $region22: #{tpu_custom_call.1} parent=5 // pred_check_branch
        %105 = sbr.rel (%p102) target = $region24
      $region23: #{tpu_custom_call.1} parent=5 // pred_region
        %s106 = ssub.s32 %s10, 1
        %s107 = sand.u32 %s23, 1
        %s108 = scalar_lea.sflag [#allocation3], %s107
        %s109 = sand.u32 %s23, 1
        %s110 = smul.addr %s109, 16
        %s111 = scalar_lea.vmem [#allocation2], %s110
        // Predicated region
        $region25: #{tpu_custom_call.1} parent=23 // pred_check
          %p112 = pneg %p36
        $region26: #{tpu_custom_call.1} parent=23 // pred_check_branch
          %114 = sbr.rel (%p112) target = $region28
        $region27: #{tpu_custom_call.1} parent=23 // pred_region
          %115 = dma.done %s108, 256
        $region28: #{tpu_custom_call.1} parent=23 // pred_fallthru
          _
        %s116 = sand.u32 %s23, 1
        %s117 = scalar_lea.sflag [#allocation3], %s116
        %s118 = sand.u32 %s23, 1
        %s119 = smul.addr %s118, 16
        %s120 = scalar_lea.vmem [#allocation2], %s119
        %p121 = pneg %p36
        %p122 = pneg %p33
        %p123 = pneg %p62
        %p124 = pneg %p59
        %p125 = scmp.lt.s32.totalorder %s15, 1
        %s126 = scalar_select %p125, %s15, 1
        %s127 = smul.addr %s126, 8
        %s128 = scalar_lea.vmem %s1, %s127
        %p129 = scmp.lt.s32.totalorder %s15, 1
        %s130 = scalar_select %p129, %s15, 1
        %s131 = smul.addr %s130, 8
        %s132 = scalar_lea.vmem %s1, %s131
        %v133 = vld [vmem:[%s111] sm:$0xff]
        %v134 = vld [vmem:[%s111 + $0x8] sm:$0xff]
        %v135 = vmul.f32 %v133, 6.0
        %v136 = vmul.f32 %v134, 6.0
        %v137 = vmul.f32 %v135, 1.442695
        %v138 = vpow.pop %v137
        %v139 = vmul.f32 %v136, 1.442695
        %v140 = vpow.pop %v139
        %v141 = vadd.f32 %v138, %v140
        %142 = vadd.xlane.f32.xlu0 %v141
        %v143 = vpop.xlane.xlu0 %142
        %v144 = vlog2.pop %v143
        %v145 = vmul.f32 %v144, 0.6931472
        %v146 = vmul.f32 %v145, 0.16666667
        %vm147 = vcmask 7168
        %148 = vst.msk [vmem:[%s132] sm:$0xff] %vm147, %v146
        %p149 = scmp.lt.s32.totalorder %s15, 1
        %s150 = scalar_select %p149, %s15, 1
        %s151 = smul.addr %s150, 8
        %s152 = scalar_lea.vmem %s1, %s151
        // Predicated region
        $region29: #{tpu_custom_call.1} parent=23 // pred_check
          %p153 = pneg %p59
        $region30: #{tpu_custom_call.1} parent=23 // pred_check_branch
          %155 = sbr.rel (%p153) target = $region32
        $region31: #{tpu_custom_call.1} parent=23 // pred_region
          _
        $region32: #{tpu_custom_call.1} parent=23 // pred_fallthru
          _
      $region24: #{tpu_custom_call.1} parent=5 // pred_fallthru
        _
      %p156 = scmp.le.s32.totalorder 2, %s10
      // Predicated region
      $region33: #{tpu_custom_call.1} parent=5 // pred_check
        %p157 = pneg %p156
      $region34: #{tpu_custom_call.1} parent=5 // pred_check_branch
        %159 = sbr.rel (%p157) target = $region36
      $region35: #{tpu_custom_call.1} parent=5 // pred_region
        %s160 = ssub.s32 %s10, 2
        // Predicated region
        $region37: #{tpu_custom_call.1} parent=35 // pred_check
          %p161 = pneg %p65
        $region38: #{tpu_custom_call.1} parent=35 // pred_check_branch
          %163 = sbr.rel (%p161) target = $region40
        $region39: #{tpu_custom_call.1} parent=35 // pred_region
          %p164 = scmp.lt.s32.totalorder %s16, 1
          %s165 = scalar_select %p164, %s16, 1
          %s166 = smul.addr %s165, 8
          %s167 = scalar_lea.vmem %s1, %s166
        $region40: #{tpu_custom_call.1} parent=35 // pred_fallthru
          _
      $region36: #{tpu_custom_call.1} parent=5 // pred_fallthru
        _
    $region6: #{tpu_custom_call.1} parent=1 // loop_footer
      %s14 = sadd.s32 1, %s10
    $region7: #{tpu_custom_call.1} parent=1 // loop_footer_branch
      %9 = sbr.rel target = $region3
    $region8: #{tpu_custom_call.1} parent=1 // loop_exit
      _
    %168 = vsyncpa [#allocation3], 1
    %s169 = scalar_lea.sflag [#allocation3], 1
    %170 = vsyncpa %s169, 1

</llo_original>
